<compile_context>
chip_gen: v7x
topology: tpu7x:2x2x1
jax: 0.10.0
libtpu: 0.0.40
codegen_flags: <defaults>
</compile_context>

<pallas_src>
import functools

import jax
import jax.numpy as jnp
from jax import lax
from jax.experimental import pallas as pl
from jax.experimental.pallas import tpu as pltpu


def _make_kernel(num_rows, f_pad, hidden_dim, tile_b, compute_dtype):
    def kernel(idx_ref, w1_ref, w2_ref, b2_ref, w3_ref, b3_ref, o_ref):
        # --- build the multi-hot feature block (F_pad, TILE_B): sum of per-row one-hots ---
        f_iota = lax.broadcasted_iota(jnp.int32, (f_pad, tile_b), 0)
        mh = (f_iota == idx_ref[0:1, :]).astype(jnp.float32)
        for r in range(1, num_rows):                      # static unroll (num_defender + 3 rows)
            mh = mh + (f_iota == idx_ref[r:r + 1, :]).astype(jnp.float32)
        # --- f1 (embedding gather + time one-hot + b1 all folded into ONE matmul) ---
        h = jnp.dot(w1_ref[...], mh.astype(compute_dtype),
                    preferred_element_type=jnp.float32)                    # (H, TILE_B)
        h = jnp.maximum(h, 0.0)
        # --- f2 ---
        h = jnp.dot(w2_ref[...], h.astype(compute_dtype),
                    preferred_element_type=jnp.float32) + b2_ref[...]
        h = jnp.maximum(h, 0.0)
        # --- f3 (hid -> 1): VPU multiply + sublane reduce instead of an N=1 MXU matmul ---
        y = jnp.sum(w3_ref[...] * h, axis=0, keepdims=True) + b3_ref[0, 0]  # (1, TILE_B)
        # --- sigmoid: exp + approx reciprocal both ride the EUP slot ---
        o_ref[...] = pl.reciprocal(1.0 + jnp.exp(-y), approx=True)

    return kernel


def value_mlp_fused(idx_t, w1_fused, w2, b2, w3, b3, *, tile_b=512, megacore=False):
    """idx_t: (num_rows, B_pad) int32 pre-offset fused indices; weights in kernel layout."""
    num_rows, b_pad = idx_t.shape
    hidden_dim, f_pad = w1_fused.shape
    assert b_pad % tile_b == 0
    num_tiles = b_pad // tile_b

    kernel = _make_kernel(num_rows, f_pad, hidden_dim, tile_b, w1_fused.dtype)

    # Constant index maps -> weights stay VMEM-resident across batch tiles.
    resident = lambda shape: pl.BlockSpec(shape, lambda i: (0, 0))

    # "parallel" on single-TC chips; CORE_PARALLEL actually shards tiles across v7x's 2 TCs.
    dim_sem = (pltpu.CORE_PARALLEL,) if megacore else ("parallel",)

    return pl.pallas_call(
        kernel,
        out_shape=jax.ShapeDtypeStruct((1, b_pad), jnp.float32),
        grid=(num_tiles,),
        in_specs=[
            pl.BlockSpec((num_rows, tile_b), lambda i: (0, i)),   # fused indices, batch on lanes
            resident((hidden_dim, f_pad)),                        # W1_fused (emb + time + b1)
            resident((hidden_dim, hidden_dim)),                   # W2
            resident((hidden_dim, 1)),                            # b2
            resident((hidden_dim, 1)),                            # w3 column
            pl.BlockSpec(memory_space=pltpu.MemorySpace.SMEM),    # b3 scalar in SMEM
        ],
        out_specs=pl.BlockSpec((1, tile_b), lambda i: (0, i)),    # lane-dense output
        compiler_params=pltpu.CompilerParams(dimension_semantics=dim_sem),
    )(idx_t, w1_fused, w2, b2, w3, b3)


def init_params(key, num_nodes, embedding_dim, num_defender, time_horizon, hidden_dim):
    """Natural-layout parameters. Linear weights use the PyTorch (out, in) convention."""
    in_dim = (num_defender + 1) * embedding_dim + time_horizon + 1
    ks = jax.random.split(key, 7)
    scale = 0.1
    emb = scale * jax.random.normal(ks[0], (num_nodes + 1, embedding_dim), jnp.float32)
    emb = emb.at[0].set(0.0)                       # padding_idx = 0
    w1 = scale * jax.random.normal(ks[1], (hidden_dim, in_dim), jnp.float32)
    b1 = scale * jax.random.normal(ks[2], (hidden_dim, 1), jnp.float32)
    w2 = scale * jax.random.normal(ks[3], (hidden_dim, hidden_dim), jnp.float32)
    b2 = scale * jax.random.normal(ks[4], (hidden_dim, 1), jnp.float32)
    w3 = scale * jax.random.normal(ks[5], (hidden_dim, 1), jnp.float32)
    b3 = scale * jax.random.normal(ks[6], (1, 1), jnp.float32)
    return emb, w1, b1, w2, b2, w3, b3


def prepare_fused_params(params, *, num_defender, embedding_dim, time_horizon,
                         compute_dtype=jnp.bfloat16):
    """Fold the embedding table, the time one-hot columns and b1 into one fused W1 (done once)."""
    emb, w1, b1, w2, b2, w3, b3 = params
    num_slots = num_defender + 1
    e_dim = embedding_dim
    t_classes = time_horizon + 1
    blocks = [w1[:, j * e_dim:(j + 1) * e_dim] @ emb.T for j in range(num_slots)]  # (H, V) each
    blocks.append(w1[:, num_slots * e_dim:num_slots * e_dim + t_classes])          # time columns
    blocks.append(b1)                                                              # bias column
    w1_fused = jnp.concatenate(blocks, axis=1)                                     # (H, F)
    f = w1_fused.shape[1]
    f_pad = ((f + 7) // 8) * 8
    if f_pad != f:
        w1_fused = jnp.pad(w1_fused, ((0, 0), (0, f_pad - f)))
    # bf16 MXU operands (f32 accumulation in-kernel); biases / w3 / b3 stay f32 (VPU/EUP math).
    return (w1_fused.astype(compute_dtype), w2.astype(compute_dtype), b2, w3, b3)


@functools.partial(jax.jit,
                   static_argnames=("num_nodes", "time_horizon", "tile_b", "megacore"))
def value_net_forward(def_pos, att_pos, time_idx, fused_params, *, num_nodes, time_horizon,
                      tile_b=512, megacore=False):
    """def_pos: (B, num_defender) int32 node ids; att_pos: (B, 1) int32; time_idx: (B,) int32."""
    w1_fused, w2, b2, w3, b3 = fused_params
    b = def_pos.shape[0]
    num_slots = def_pos.shape[1] + 1
    v = num_nodes + 1
    t_classes = time_horizon + 1

    idx = jnp.concatenate([def_pos, att_pos], axis=-1).astype(jnp.int32)       # (B, num_slots)
    offs = (jnp.arange(num_slots, dtype=jnp.int32) * v)[None, :]
    fused_idx = jnp.concatenate(
        [idx + offs,                                                           # node slots
         num_slots * v + time_idx.astype(jnp.int32).reshape(b, 1),             # time slot
         jnp.full((b, 1), num_slots * v + t_classes, jnp.int32)],              # bias slot
        axis=-1)                                                               # (B, num_slots+2)

    b_pad = ((b + tile_b - 1) // tile_b) * tile_b
    # Padded batch columns get fused index 0 (slot-0 / padding node 0 -> zero column);
    # they are sliced off below anyway.
    idx_t = jnp.zeros((fused_idx.shape[1], b_pad), jnp.int32).at[:, :b].set(fused_idx.T)

    out = value_mlp_fused(idx_t, w1_fused, w2, b2, w3, b3,
                          tile_b=tile_b, megacore=megacore)
    return out[0, :b].reshape(b, 1)


if __name__ == "__main__":
    # Small, module-consistent sizes.
    num_nodes = 16
    embedding_dim = 8
    num_defender = 2
    time_horizon = 7          # -> one-hot of size 8
    hidden_dim = 32
    batch = 2

    key = jax.random.PRNGKey(0)
    pkey, dkey = jax.random.split(key)
    params = init_params(pkey, num_nodes, embedding_dim, num_defender,
                         time_horizon, hidden_dim)
    fused = prepare_fused_params(params, num_defender=num_defender,
                                 embedding_dim=embedding_dim, time_horizon=time_horizon,
                                 compute_dtype=jnp.bfloat16)

    k1, k2, k3 = jax.random.split(dkey, 3)
    def_pos = jax.random.randint(k1, (batch, num_defender), 1, num_nodes + 1, dtype=jnp.int32)
    att_pos = jax.random.randint(k2, (batch, 1), 1, num_nodes + 1, dtype=jnp.int32)
    time_idx = jax.random.randint(k3, (batch,), 0, time_horizon + 1, dtype=jnp.int32)

    out = value_net_forward(def_pos, att_pos, time_idx, fused,
                            num_nodes=num_nodes, time_horizon=time_horizon)
    out = jax.block_until_ready(out)
    assert out.shape == (batch, 1)

    # Pure-JAX f32 reference (natural layout; Linear weights are (out, in) like PyTorch).
    emb, w1, b1, w2, b2, w3, b3 = params
    idx = jnp.concatenate([def_pos, att_pos], axis=-1)
    x = jnp.concatenate(
        [emb[idx].reshape(batch, -1),
         jax.nn.one_hot(time_idx, time_horizon + 1, dtype=jnp.float32)], axis=-1)
    h = jnp.maximum(x @ w1.T + b1.T, 0.0)
    h = jnp.maximum(h @ w2.T + b2.T, 0.0)
    ref = jax.nn.sigmoid(h @ w3 + b3)
    # Tolerance loosened vs the f32 reference because MXU operands are bf16 and the sigmoid
    # uses the approx EUP reciprocal (observed error is ~1e-3 on these sizes).
    assert jnp.allclose(out, ref, atol=2e-2, rtol=2e-2), (out, ref)

    print("KERNEL_OK")
</pallas_src>

<mosaic_0001>
module attributes {stable_mosaic.version = 11 : i64} {
  func.func @kernel(%arg0: i32, %arg1: memref<5x512xi32, #tpu.memory_space<vmem>>, %arg2: memref<32x64xbf16, #tpu.memory_space<vmem>>, %arg3: memref<32x32xbf16, #tpu.memory_space<vmem>>, %arg4: memref<32x1xf32, #tpu.memory_space<vmem>>, %arg5: memref<32x1xf32, #tpu.memory_space<vmem>>, %arg6: memref<1x1xf32, #tpu.memory_space<smem>>, %arg7: memref<1x512xf32, #tpu.memory_space<vmem>>) attributes {dimension_semantics = [#tpu.dimension_semantics<parallel>], iteration_bounds = array<i64: 1>, scalar_prefetch = 0 : i64, scratch_operands = 0 : i64, tpu.core_type = #tpu.core_type<tc>, window_params = [{transform_indices = @transform_0, window_bounds = array<i64: 5, 512>}, {pipeline_mode = #tpu.pipeline_mode<synchronous>, transform_indices = @transform_1, window_bounds = array<i64: 32, 64>}, {pipeline_mode = #tpu.pipeline_mode<synchronous>, transform_indices = @transform_2, window_bounds = array<i64: 32, 32>}, {pipeline_mode = #tpu.pipeline_mode<synchronous>, transform_indices = @transform_3, window_bounds = array<i64: 32, 1>}, {pipeline_mode = #tpu.pipeline_mode<synchronous>, transform_indices = @transform_4, window_bounds = array<i64: 32, 1>}, {transform_indices = @transform_5, window_bounds = array<i64: 1, 1>}, {transform_indices = @transform_6, window_bounds = array<i64: 1, 512>}]} {
    %0 = tpu.iota {dimensions = array<i32: 0>} : vector<64x512xi32>
    %c0 = arith.constant 0 : index
    %c0_0 = arith.constant 0 : index
    %1 = vector.load %arg1[%c0, %c0_0] : memref<5x512xi32, #tpu.memory_space<vmem>>, vector<1x512xi32>
    %2 = vector.broadcast %1 : vector<1x512xi32> to vector<64x512xi32>
    %3 = arith.cmpi eq, %0, %2 : vector<64x512xi32>
    %4 = arith.extui %3 : vector<64x512xi1> to vector<64x512xi32>
    %5 = arith.sitofp %4 : vector<64x512xi32> to vector<64x512xf32>
    %c1 = arith.constant 1 : index
    %c0_1 = arith.constant 0 : index
    %6 = vector.load %arg1[%c1, %c0_1] : memref<5x512xi32, #tpu.memory_space<vmem>>, vector<1x512xi32>
    %7 = vector.broadcast %6 : vector<1x512xi32> to vector<64x512xi32>
    %8 = arith.cmpi eq, %0, %7 : vector<64x512xi32>
    %9 = arith.extui %8 : vector<64x512xi1> to vector<64x512xi32>
    %10 = arith.sitofp %9 : vector<64x512xi32> to vector<64x512xf32>
    %11 = arith.addf %5, %10 : vector<64x512xf32>
    %c2 = arith.constant 2 : index
    %c0_2 = arith.constant 0 : index
    %12 = vector.load %arg1[%c2, %c0_2] : memref<5x512xi32, #tpu.memory_space<vmem>>, vector<1x512xi32>
    %13 = vector.broadcast %12 : vector<1x512xi32> to vector<64x512xi32>
    %14 = arith.cmpi eq, %0, %13 : vector<64x512xi32>
    %15 = arith.extui %14 : vector<64x512xi1> to vector<64x512xi32>
    %16 = arith.sitofp %15 : vector<64x512xi32> to vector<64x512xf32>
    %17 = arith.addf %11, %16 : vector<64x512xf32>
    %c3 = arith.constant 3 : index
    %c0_3 = arith.constant 0 : index
    %18 = vector.load %arg1[%c3, %c0_3] : memref<5x512xi32, #tpu.memory_space<vmem>>, vector<1x512xi32>
    %19 = vector.broadcast %18 : vector<1x512xi32> to vector<64x512xi32>
    %20 = arith.cmpi eq, %0, %19 : vector<64x512xi32>
    %21 = arith.extui %20 : vector<64x512xi1> to vector<64x512xi32>
    %22 = arith.sitofp %21 : vector<64x512xi32> to vector<64x512xf32>
    %23 = arith.addf %17, %22 : vector<64x512xf32>
    %c4 = arith.constant 4 : index
    %c0_4 = arith.constant 0 : index
    %24 = vector.load %arg1[%c4, %c0_4] : memref<5x512xi32, #tpu.memory_space<vmem>>, vector<1x512xi32>
    %25 = vector.broadcast %24 : vector<1x512xi32> to vector<64x512xi32>
    %26 = arith.cmpi eq, %0, %25 : vector<64x512xi32>
    %27 = arith.extui %26 : vector<64x512xi1> to vector<64x512xi32>
    %28 = arith.sitofp %27 : vector<64x512xi32> to vector<64x512xf32>
    %29 = arith.addf %23, %28 : vector<64x512xf32>
    %c0_5 = arith.constant 0 : index
    %c0_6 = arith.constant 0 : index
    %30 = vector.load %arg2[%c0_5, %c0_6] : memref<32x64xbf16, #tpu.memory_space<vmem>>, vector<32x64xbf16>
    %31 = arith.truncf %29 : vector<64x512xf32> to vector<64x512xbf16>
    %cst = arith.constant dense<0.000000e+00> : vector<32x512xf32>
    %32 = tpu.matmul %30, %31, %cst {dimension_numbers = #tpu.dot_dimension_numbers<[1], [0], [0], [1], [0, 0, 1, 1], [], []>} : vector<32x64xbf16>, vector<64x512xbf16>, vector<32x512xf32> -> vector<32x512xf32>
    %cst_7 = arith.constant 0.000000e+00 : f32
    %33 = vector.broadcast %cst_7 : f32 to vector<32x512xf32>
    %34 = arith.maximumf %32, %33 : vector<32x512xf32>
    %c0_8 = arith.constant 0 : index
    %c0_9 = arith.constant 0 : index
    %35 = vector.load %arg3[%c0_8, %c0_9] : memref<32x32xbf16, #tpu.memory_space<vmem>>, vector<32x32xbf16>
    %36 = arith.truncf %34 : vector<32x512xf32> to vector<32x512xbf16>
    %cst_10 = arith.constant dense<0.000000e+00> : vector<32x512xf32>
    %37 = tpu.matmul %35, %36, %cst_10 {dimension_numbers = #tpu.dot_dimension_numbers<[1], [0], [0], [1], [0, 0, 1, 1], [], []>} : vector<32x32xbf16>, vector<32x512xbf16>, vector<32x512xf32> -> vector<32x512xf32>
    %c0_11 = arith.constant 0 : index
    %c0_12 = arith.constant 0 : index
    %38 = vector.load %arg4[%c0_11, %c0_12] : memref<32x1xf32, #tpu.memory_space<vmem>>, vector<32x1xf32>
    %39 = vector.broadcast %38 : vector<32x1xf32> to vector<32x512xf32>
    %40 = arith.addf %37, %39 : vector<32x512xf32>
    %cst_13 = arith.constant 0.000000e+00 : f32
    %41 = vector.broadcast %cst_13 : f32 to vector<32x512xf32>
    %42 = arith.maximumf %40, %41 : vector<32x512xf32>
    %c0_14 = arith.constant 0 : index
    %c0_15 = arith.constant 0 : index
    %43 = vector.load %arg5[%c0_14, %c0_15] : memref<32x1xf32, #tpu.memory_space<vmem>>, vector<32x1xf32>
    %44 = vector.broadcast %43 : vector<32x1xf32> to vector<32x512xf32>
    %45 = arith.mulf %44, %42 : vector<32x512xf32>
    %cst_16 = arith.constant dense<0.000000e+00> : vector<512xf32>
    %46 = vector.multi_reduction <add>, %45, %cst_16 [0] : vector<32x512xf32> to vector<512xf32>
    %47 = vector.shape_cast %46 : vector<512xf32> to vector<1x512xf32>
    %c0_17 = arith.constant 0 : index
    %c0_18 = arith.constant 0 : index
    %48 = memref.load %arg6[%c0_17, %c0_18] : memref<1x1xf32, #tpu.memory_space<smem>>
    %49 = vector.broadcast %48 : f32 to vector<1x512xf32>
    %50 = arith.addf %47, %49 : vector<1x512xf32>
    %cst_19 = arith.constant 0.000000e+00 : f32
    %51 = vector.broadcast %cst_19 : f32 to vector<1x512xf32>
    %52 = arith.subf %51, %50 : vector<1x512xf32>
    %53 = math.exp %52 : vector<1x512xf32>
    %cst_20 = arith.constant 1.000000e+00 : f32
    %54 = vector.broadcast %cst_20 : f32 to vector<1x512xf32>
    %55 = arith.addf %54, %53 : vector<1x512xf32>
    %56 = tpu.reciprocal %55 {approx = true} : vector<1x512xf32> -> vector<1x512xf32>
    %c0_21 = arith.constant 0 : index
    %c0_22 = arith.constant 0 : index
    %57 = vector.load %arg7[%c0_21, %c0_22] : memref<1x512xf32, #tpu.memory_space<vmem>>, vector<1x512xf32>
    tpu.vector_store %arg7[%c0_21, %c0_22], %56 {strides = array<i32>} : memref<1x512xf32, #tpu.memory_space<vmem>>, vector<1x512xf32>,
    return
  }
  func.func @transform_0(%arg0: i32) -> (i32, i32) {
    %c0_i32 = arith.constant 0 : i32
    %c0_i32_0 = arith.constant 0 : i32
    return %c0_i32, %arg0 : i32, i32
  }
  func.func @transform_1(%arg0: i32) -> (i32, i32) {
    %c0_i32 = arith.constant 0 : i32
    %c0_i32_0 = arith.constant 0 : i32
    %c0_i32_1 = arith.constant 0 : i32
    return %c0_i32, %c0_i32_0 : i32, i32
  }
  func.func @transform_2(%arg0: i32) -> (i32, i32) {
    %c0_i32 = arith.constant 0 : i32
    %c0_i32_0 = arith.constant 0 : i32
    %c0_i32_1 = arith.constant 0 : i32
    return %c0_i32, %c0_i32_0 : i32, i32
  }
  func.func @transform_3(%arg0: i32) -> (i32, i32) {
    %c0_i32 = arith.constant 0 : i32
    %c0_i32_0 = arith.constant 0 : i32
    %c0_i32_1 = arith.constant 0 : i32
    return %c0_i32, %c0_i32_0 : i32, i32
  }
  func.func @transform_4(%arg0: i32) -> (i32, i32) {
    %c0_i32 = arith.constant 0 : i32
    %c0_i32_0 = arith.constant 0 : i32
    %c0_i32_1 = arith.constant 0 : i32
    return %c0_i32, %c0_i32_0 : i32, i32
  }
  func.func @transform_5(%arg0: i32) -> (i32, i32) {
    %c0_i32 = arith.constant 0 : i32
    %c0_i32_0 = arith.constant 0 : i32
    %c0_i32_1 = arith.constant 0 : i32
    return %c0_i32, %c0_i32_0 : i32, i32
  }
  func.func @transform_6(%arg0: i32) -> (i32, i32) {
    %c0_i32 = arith.constant 0 : i32
    %c0_i32_0 = arith.constant 0 : i32
    return %c0_i32, %arg0 : i32, i32
  }
}

</mosaic_0001>

<llo_original>
// kernel: value_net_forward.1
$region0: #{value_net_forward.1}
  #allocation0 [shape = 'u32[]', space=smem, size = 0x4, offset = 0x4, fixed_abs, tag = 'smem constant byte address 0x4 - core index']
  #allocation1 [shape = 'u32[144,128]{1,0:T(1,128)}', space=vmem, size = 0x12000, scoped, tag = 'internal scratch']
  #allocation2 [shape = 'f32[1,1]{1,0:T(1,128)S(6)}', space=smem, size = 0x200, scoped, tag = 'scoped memory for value_net_forward.1']
  %s0 = inlined_call_operand.vmem [shape: s32[5,512], index: 0, kind: input, shape index: {}]
  %s1 = inlined_call_operand.vmem [shape: bf16[32,64], index: 1, kind: input, shape index: {}]
  %s2 = inlined_call_operand.vmem [shape: bf16[32,32], index: 2, kind: input, shape index: {}]
  %s3 = inlined_call_operand.vmem [shape: f32[32,1], index: 3, kind: input, shape index: {}]
  %s4 = inlined_call_operand.vmem [shape: f32[32,1], index: 4, kind: input, shape index: {}]
  %s5 = inlined_call_operand.<no memory space> [shape: f32[1,1], index: 5, kind: input, shape index: {}]
  %s6 = inlined_call_operand.vmem [shape: f32[1,512], index: 6, kind: output, shape index: {}]
  %s7 = sld [smem:[#allocation0]]
  $region34: #{value_net_forward.1} parent=0
    _
  %s9 = ssub.s32 1, %s7
  %s10 = scalar_select 0, %s9, %s7
  %11 = sst [smem:[#allocation2]] %s5
  // Predicated region
  $region2: #{value_net_forward.1} parent=0 // pred_check
    _
  $region3: #{value_net_forward.1} parent=0 // pred_check_branch
    %13 = sbr.rel (0) target = $region5
  $region4: #{value_net_forward.1} parent=0 // pred_region
    _
  $region5: #{value_net_forward.1} parent=0 // pred_fallthru
    _
  // Predicated region
  $region6: #{value_net_forward.1} parent=0 // pred_check
    _
  $region7: #{value_net_forward.1} parent=0 // pred_check_branch
    %15 = sbr.rel (0) target = $region9
  $region8: #{value_net_forward.1} parent=0 // pred_region
    _
  $region9: #{value_net_forward.1} parent=0 // pred_fallthru
    _
  // Predicated region
  $region10: #{value_net_forward.1} parent=0 // pred_check
    _
  $region11: #{value_net_forward.1} parent=0 // pred_check_branch
    %17 = sbr.rel (0) target = $region13
  $region12: #{value_net_forward.1} parent=0 // pred_region
    _
  $region13: #{value_net_forward.1} parent=0 // pred_fallthru
    _
  // Predicated region
  $region14: #{value_net_forward.1} parent=0 // pred_check
    _
  $region15: #{value_net_forward.1} parent=0 // pred_check_branch
    %19 = sbr.rel (0) target = $region17
  $region16: #{value_net_forward.1} parent=0 // pred_region
    _
  $region17: #{value_net_forward.1} parent=0 // pred_fallthru
    _
  // Predicated region
  $region18: #{value_net_forward.1} parent=0 // pred_check
    _
  $region19: #{value_net_forward.1} parent=0 // pred_check_branch
    %21 = sbr.rel (0) target = $region21
  $region20: #{value_net_forward.1} parent=0 // pred_region
    _
  $region21: #{value_net_forward.1} parent=0 // pred_fallthru
    _
  // Predicated region
  $region22: #{value_net_forward.1} parent=0 // pred_check
    _
  $region23: #{value_net_forward.1} parent=0 // pred_check_branch
    %23 = sbr.rel (0) target = $region25
  $region24: #{value_net_forward.1} parent=0 // pred_region
    _
  $region25: #{value_net_forward.1} parent=0 // pred_fallthru
    _
  %v25 = vlaneseq
  %v26 = vshrl.u32 %v25, 7
  %v27 = vadd.s32 %v26, 8
  %v28 = vadd.s32 %v26, 16
  %v29 = vadd.s32 %v26, 24
  %v30 = vadd.s32 %v26, 32
  %v31 = vadd.s32 %v26, 40
  %v32 = vadd.s32 %v26, 48
  %v33 = vadd.s32 %v26, 56
  %v34 = vld [vmem:[%s0] ss:$8 sm:$0xf]
  %v35 = vlaneseq
  %v36 = vshrl.u32 %v35, 7
  %v37 = vsub.s32 0, %v36
  %v38 = vrot.slane %v34, %v37
  %v39 = vlaneseq
  %v40 = vshrl.u32 %v39, 7
  %v41 = vsub.s32 1, %v40
  %v42 = vrot.slane %v34, %v41
  %v43 = vlaneseq
  %v44 = vshrl.u32 %v43, 7
  %v45 = vsub.s32 2, %v44
  %v46 = vrot.slane %v34, %v45
  %v47 = vlaneseq
  %v48 = vshrl.u32 %v47, 7
  %v49 = vsub.s32 3, %v48
  %v50 = vrot.slane %v34, %v49
  %vm51 = vcmp.eq.s32.totalorder %v26, %v38
  %vm52 = vcmp.eq.s32.totalorder %v26, %v42
  %vm53 = vcmp.eq.s32.totalorder %v26, %v46
  %vm54 = vcmp.eq.s32.totalorder %v26, %v50
  %vm55 = vcmp.eq.s32.totalorder %v27, %v38
  %vm56 = vcmp.eq.s32.totalorder %v27, %v42
  %vm57 = vcmp.eq.s32.totalorder %v27, %v46
  %vm58 = vcmp.eq.s32.totalorder %v27, %v50
  %vm59 = vcmp.eq.s32.totalorder %v28, %v38
  %vm60 = vcmp.eq.s32.totalorder %v28, %v42
  %vm61 = vcmp.eq.s32.totalorder %v28, %v46
  %vm62 = vcmp.eq.s32.totalorder %v28, %v50
  %vm63 = vcmp.eq.s32.totalorder %v29, %v38
  %vm64 = vcmp.eq.s32.totalorder %v29, %v42
  %vm65 = vcmp.eq.s32.totalorder %v29, %v46
  %vm66 = vcmp.eq.s32.totalorder %v29, %v50
  %vm67 = vcmp.eq.s32.totalorder %v30, %v38
  %vm68 = vcmp.eq.s32.totalorder %v30, %v42
  %vm69 = vcmp.eq.s32.totalorder %v30, %v46
  %vm70 = vcmp.eq.s32.totalorder %v30, %v50
  %vm71 = vcmp.eq.s32.totalorder %v31, %v38
  %vm72 = vcmp.eq.s32.totalorder %v31, %v42
  %vm73 = vcmp.eq.s32.totalorder %v31, %v46
  %vm74 = vcmp.eq.s32.totalorder %v31, %v50
  %vm75 = vcmp.eq.s32.totalorder %v32, %v38
  %vm76 = vcmp.eq.s32.totalorder %v32, %v42
  %vm77 = vcmp.eq.s32.totalorder %v32, %v46
  %vm78 = vcmp.eq.s32.totalorder %v32, %v50
  %vm79 = vcmp.eq.s32.totalorder %v33, %v38
  %vm80 = vcmp.eq.s32.totalorder %v33, %v42
  %vm81 = vcmp.eq.s32.totalorder %v33, %v46
  %vm82 = vcmp.eq.s32.totalorder %v33, %v50
  %v83 = vsel %vm51, 1, 0
  %v84 = vsel %vm52, 1, 0
  %v85 = vsel %vm53, 1, 0
  %v86 = vsel %vm54, 1, 0
  %v87 = vsel %vm55, 1, 0
  %v88 = vsel %vm56, 1, 0
  %v89 = vsel %vm57, 1, 0
  %v90 = vsel %vm58, 1, 0
  %v91 = vsel %vm59, 1, 0
  %v92 = vsel %vm60, 1, 0
  %v93 = vsel %vm61, 1, 0
  %v94 = vsel %vm62, 1, 0
  %v95 = vsel %vm63, 1, 0
  %v96 = vsel %vm64, 1, 0
  %v97 = vsel %vm65, 1, 0
  %v98 = vsel %vm66, 1, 0
  %v99 = vsel %vm67, 1, 0
  %v100 = vsel %vm68, 1, 0
  %v101 = vsel %vm69, 1, 0
  %v102 = vsel %vm70, 1, 0
  %v103 = vsel %vm71, 1, 0
  %v104 = vsel %vm72, 1, 0
  %v105 = vsel %vm73, 1, 0
  %v106 = vsel %vm74, 1, 0
  %v107 = vsel %vm75, 1, 0
  %v108 = vsel %vm76, 1, 0
  %v109 = vsel %vm77, 1, 0
  %v110 = vsel %vm78, 1, 0
  %v111 = vsel %vm79, 1, 0
  %v112 = vsel %vm80, 1, 0
  %v113 = vsel %vm81, 1, 0
  %v114 = vsel %vm82, 1, 0
  %v115 = vcvt.s32.f32 %v83
  %v116 = vcvt.s32.f32 %v84
  %v117 = vcvt.s32.f32 %v85
  %v118 = vcvt.s32.f32 %v86
  %v119 = vcvt.s32.f32 %v87
  %v120 = vcvt.s32.f32 %v88
  %v121 = vcvt.s32.f32 %v89
  %v122 = vcvt.s32.f32 %v90
  %v123 = vcvt.s32.f32 %v91
  %v124 = vcvt.s32.f32 %v92
  %v125 = vcvt.s32.f32 %v93
  %v126 = vcvt.s32.f32 %v94
  %v127 = vcvt.s32.f32 %v95
  %v128 = vcvt.s32.f32 %v96
  %v129 = vcvt.s32.f32 %v97
  %v130 = vcvt.s32.f32 %v98
  %v131 = vcvt.s32.f32 %v99
  %v132 = vcvt.s32.f32 %v100
  %v133 = vcvt.s32.f32 %v101
  %v134 = vcvt.s32.f32 %v102
  %v135 = vcvt.s32.f32 %v103
  %v136 = vcvt.s32.f32 %v104
  %v137 = vcvt.s32.f32 %v105
  %v138 = vcvt.s32.f32 %v106
  %v139 = vcvt.s32.f32 %v107
  %v140 = vcvt.s32.f32 %v108
  %v141 = vcvt.s32.f32 %v109
  %v142 = vcvt.s32.f32 %v110
  %v143 = vcvt.s32.f32 %v111
  %v144 = vcvt.s32.f32 %v112
  %v145 = vcvt.s32.f32 %v113
  %v146 = vcvt.s32.f32 %v114
  %s147 = scalar_lea.vmem %s0, 1
  %v148 = vld [vmem:[%s147] ss:$8 sm:$0xf]
  %v149 = vlaneseq
  %v150 = vshrl.u32 %v149, 7
  %v151 = vsub.s32 0, %v150
  %v152 = vrot.slane %v148, %v151
  %v153 = vlaneseq
  %v154 = vshrl.u32 %v153, 7
  %v155 = vsub.s32 1, %v154
  %v156 = vrot.slane %v148, %v155
  %v157 = vlaneseq
  %v158 = vshrl.u32 %v157, 7
  %v159 = vsub.s32 2, %v158
  %v160 = vrot.slane %v148, %v159
  %v161 = vlaneseq
  %v162 = vshrl.u32 %v161, 7
  %v163 = vsub.s32 3, %v162
  %v164 = vrot.slane %v148, %v163
  %vm165 = vcmp.eq.s32.totalorder %v26, %v152
  %vm166 = vcmp.eq.s32.totalorder %v26, %v156
  %vm167 = vcmp.eq.s32.totalorder %v26, %v160
  %vm168 = vcmp.eq.s32.totalorder %v26, %v164
  %vm169 = vcmp.eq.s32.totalorder %v27, %v152
  %vm170 = vcmp.eq.s32.totalorder %v27, %v156
  %vm171 = vcmp.eq.s32.totalorder %v27, %v160
  %vm172 = vcmp.eq.s32.totalorder %v27, %v164
  %vm173 = vcmp.eq.s32.totalorder %v28, %v152
  %vm174 = vcmp.eq.s32.totalorder %v28, %v156
  %vm175 = vcmp.eq.s32.totalorder %v28, %v160
  %vm176 = vcmp.eq.s32.totalorder %v28, %v164
  %vm177 = vcmp.eq.s32.totalorder %v29, %v152
  %vm178 = vcmp.eq.s32.totalorder %v29, %v156
  %vm179 = vcmp.eq.s32.totalorder %v29, %v160
  %vm180 = vcmp.eq.s32.totalorder %v29, %v164
  %vm181 = vcmp.eq.s32.totalorder %v30, %v152
  %vm182 = vcmp.eq.s32.totalorder %v30, %v156
  %vm183 = vcmp.eq.s32.totalorder %v30, %v160
  %vm184 = vcmp.eq.s32.totalorder %v30, %v164
  %vm185 = vcmp.eq.s32.totalorder %v31, %v152
  %vm186 = vcmp.eq.s32.totalorder %v31, %v156
  %vm187 = vcmp.eq.s32.totalorder %v31, %v160
  %vm188 = vcmp.eq.s32.totalorder %v31, %v164
  %vm189 = vcmp.eq.s32.totalorder %v32, %v152
  %vm190 = vcmp.eq.s32.totalorder %v32, %v156
  %vm191 = vcmp.eq.s32.totalorder %v32, %v160
  %vm192 = vcmp.eq.s32.totalorder %v32, %v164
  %vm193 = vcmp.eq.s32.totalorder %v33, %v152
  %vm194 = vcmp.eq.s32.totalorder %v33, %v156
  %vm195 = vcmp.eq.s32.totalorder %v33, %v160
  %vm196 = vcmp.eq.s32.totalorder %v33, %v164
  %v197 = vsel %vm165, 1, 0
  %v198 = vsel %vm166, 1, 0
  %v199 = vsel %vm167, 1, 0
  %v200 = vsel %vm168, 1, 0
  %v201 = vsel %vm169, 1, 0
  %v202 = vsel %vm170, 1, 0
  %v203 = vsel %vm171, 1, 0
  %v204 = vsel %vm172, 1, 0
  %v205 = vsel %vm173, 1, 0
  %v206 = vsel %vm174, 1, 0
  %v207 = vsel %vm175, 1, 0
  %v208 = vsel %vm176, 1, 0
  %v209 = vsel %vm177, 1, 0
  %v210 = vsel %vm178, 1, 0
  %v211 = vsel %vm179, 1, 0
  %v212 = vsel %vm180, 1, 0
  %v213 = vsel %vm181, 1, 0
  %v214 = vsel %vm182, 1, 0
  %v215 = vsel %vm183, 1, 0
  %v216 = vsel %vm184, 1, 0
  %v217 = vsel %vm185, 1, 0
  %v218 = vsel %vm186, 1, 0
  %v219 = vsel %vm187, 1, 0
  %v220 = vsel %vm188, 1, 0
  %v221 = vsel %vm189, 1, 0
  %v222 = vsel %vm190, 1, 0
  %v223 = vsel %vm191, 1, 0
  %v224 = vsel %vm192, 1, 0
  %v225 = vsel %vm193, 1, 0
  %v226 = vsel %vm194, 1, 0
  %v227 = vsel %vm195, 1, 0
  %v228 = vsel %vm196, 1, 0
  %v229 = vcvt.s32.f32 %v197
  %v230 = vcvt.s32.f32 %v198
  %v231 = vcvt.s32.f32 %v199
  %v232 = vcvt.s32.f32 %v200
  %v233 = vcvt.s32.f32 %v201
  %v234 = vcvt.s32.f32 %v202
  %v235 = vcvt.s32.f32 %v203
  %v236 = vcvt.s32.f32 %v204
  %v237 = vcvt.s32.f32 %v205
  %v238 = vcvt.s32.f32 %v206
  %v239 = vcvt.s32.f32 %v207
  %v240 = vcvt.s32.f32 %v208
  %v241 = vcvt.s32.f32 %v209
  %v242 = vcvt.s32.f32 %v210
  %v243 = vcvt.s32.f32 %v211
  %v244 = vcvt.s32.f32 %v212
  %v245 = vcvt.s32.f32 %v213
  %v246 = vcvt.s32.f32 %v214
  %v247 = vcvt.s32.f32 %v215
  %v248 = vcvt.s32.f32 %v216
  %v249 = vcvt.s32.f32 %v217
  %v250 = vcvt.s32.f32 %v218
  %v251 = vcvt.s32.f32 %v219
  %v252 = vcvt.s32.f32 %v220
  %v253 = vcvt.s32.f32 %v221
  %v254 = vcvt.s32.f32 %v222
  %v255 = vcvt.s32.f32 %v223
  %v256 = vcvt.s32.f32 %v224
  %v257 = vcvt.s32.f32 %v225
  %v258 = vcvt.s32.f32 %v226
  %v259 = vcvt.s32.f32 %v227
  %v260 = vcvt.s32.f32 %v228
  %v261 = vadd.f32 %v115, %v229
  %v262 = vadd.f32 %v116, %v230
  %v263 = vadd.f32 %v117, %v231
  %v264 = vadd.f32 %v118, %v232
  %v265 = vadd.f32 %v119, %v233
  %v266 = vadd.f32 %v120, %v234
  %v267 = vadd.f32 %v121, %v235
  %v268 = vadd.f32 %v122, %v236
  %v269 = vadd.f32 %v123, %v237
  %v270 = vadd.f32 %v124, %v238
  %v271 = vadd.f32 %v125, %v239
  %v272 = vadd.f32 %v126, %v240
  %v273 = vadd.f32 %v127, %v241
  %v274 = vadd.f32 %v128, %v242
  %v275 = vadd.f32 %v129, %v243
  %v276 = vadd.f32 %v130, %v244
  %v277 = vadd.f32 %v131, %v245
  %v278 = vadd.f32 %v132, %v246
  %v279 = vadd.f32 %v133, %v247
  %v280 = vadd.f32 %v134, %v248
  %v281 = vadd.f32 %v135, %v249
  %v282 = vadd.f32 %v136, %v250
  %v283 = vadd.f32 %v137, %v251
  %v284 = vadd.f32 %v138, %v252
  %v285 = vadd.f32 %v139, %v253
  %v286 = vadd.f32 %v140, %v254
  %v287 = vadd.f32 %v141, %v255
  %v288 = vadd.f32 %v142, %v256
  %v289 = vadd.f32 %v143, %v257
  %v290 = vadd.f32 %v144, %v258
  %v291 = vadd.f32 %v145, %v259
  %v292 = vadd.f32 %v146, %v260
  %s293 = scalar_lea.vmem %s0, 2
  %v294 = vld [vmem:[%s293] ss:$8 sm:$0xf]
  %v295 = vlaneseq
  %v296 = vshrl.u32 %v295, 7
  %v297 = vsub.s32 0, %v296
  %v298 = vrot.slane %v294, %v297
  %v299 = vlaneseq
  %v300 = vshrl.u32 %v299, 7
  %v301 = vsub.s32 1, %v300
  %v302 = vrot.slane %v294, %v301
  %v303 = vlaneseq
  %v304 = vshrl.u32 %v303, 7
  %v305 = vsub.s32 2, %v304
  %v306 = vrot.slane %v294, %v305
  %v307 = vlaneseq
  %v308 = vshrl.u32 %v307, 7
  %v309 = vsub.s32 3, %v308
  %v310 = vrot.slane %v294, %v309
  %vm311 = vcmp.eq.s32.totalorder %v26, %v298
  %vm312 = vcmp.eq.s32.totalorder %v26, %v302
  %vm313 = vcmp.eq.s32.totalorder %v26, %v306
  %vm314 = vcmp.eq.s32.totalorder %v26, %v310
  %vm315 = vcmp.eq.s32.totalorder %v27, %v298
  %vm316 = vcmp.eq.s32.totalorder %v27, %v302
  %vm317 = vcmp.eq.s32.totalorder %v27, %v306
  %vm318 = vcmp.eq.s32.totalorder %v27, %v310
  %vm319 = vcmp.eq.s32.totalorder %v28, %v298
  %vm320 = vcmp.eq.s32.totalorder %v28, %v302
  %vm321 = vcmp.eq.s32.totalorder %v28, %v306
  %vm322 = vcmp.eq.s32.totalorder %v28, %v310
  %vm323 = vcmp.eq.s32.totalorder %v29, %v298
  %vm324 = vcmp.eq.s32.totalorder %v29, %v302
  %vm325 = vcmp.eq.s32.totalorder %v29, %v306
  %vm326 = vcmp.eq.s32.totalorder %v29, %v310
  %vm327 = vcmp.eq.s32.totalorder %v30, %v298
  %vm328 = vcmp.eq.s32.totalorder %v30, %v302
  %vm329 = vcmp.eq.s32.totalorder %v30, %v306
  %vm330 = vcmp.eq.s32.totalorder %v30, %v310
  %vm331 = vcmp.eq.s32.totalorder %v31, %v298
  %vm332 = vcmp.eq.s32.totalorder %v31, %v302
  %vm333 = vcmp.eq.s32.totalorder %v31, %v306
  %vm334 = vcmp.eq.s32.totalorder %v31, %v310
  %vm335 = vcmp.eq.s32.totalorder %v32, %v298
  %vm336 = vcmp.eq.s32.totalorder %v32, %v302
  %vm337 = vcmp.eq.s32.totalorder %v32, %v306
  %vm338 = vcmp.eq.s32.totalorder %v32, %v310
  %vm339 = vcmp.eq.s32.totalorder %v33, %v298
  %vm340 = vcmp.eq.s32.totalorder %v33, %v302
  %vm341 = vcmp.eq.s32.totalorder %v33, %v306
  %vm342 = vcmp.eq.s32.totalorder %v33, %v310
  %v343 = vsel %vm311, 1, 0
  %v344 = vsel %vm312, 1, 0
  %v345 = vsel %vm313, 1, 0
  %v346 = vsel %vm314, 1, 0
  %v347 = vsel %vm315, 1, 0
  %v348 = vsel %vm316, 1, 0
  %v349 = vsel %vm317, 1, 0
  %v350 = vsel %vm318, 1, 0
  %v351 = vsel %vm319, 1, 0
  %v352 = vsel %vm320, 1, 0
  %v353 = vsel %vm321, 1, 0
  %v354 = vsel %vm322, 1, 0
  %v355 = vsel %vm323, 1, 0
  %v356 = vsel %vm324, 1, 0
  %v357 = vsel %vm325, 1, 0
  %v358 = vsel %vm326, 1, 0
  %v359 = vsel %vm327, 1, 0
  %v360 = vsel %vm328, 1, 0
  %v361 = vsel %vm329, 1, 0
  %v362 = vsel %vm330, 1, 0
  %v363 = vsel %vm331, 1, 0
  %v364 = vsel %vm332, 1, 0
  %v365 = vsel %vm333, 1, 0
  %v366 = vsel %vm334, 1, 0
  %v367 = vsel %vm335, 1, 0
  %v368 = vsel %vm336, 1, 0
  %v369 = vsel %vm337, 1, 0
  %v370 = vsel %vm338, 1, 0
  %v371 = vsel %vm339, 1, 0
  %v372 = vsel %vm340, 1, 0
  %v373 = vsel %vm341, 1, 0
  %v374 = vsel %vm342, 1, 0
  %v375 = vcvt.s32.f32 %v343
  %v376 = vcvt.s32.f32 %v344
  %v377 = vcvt.s32.f32 %v345
  %v378 = vcvt.s32.f32 %v346
  %v379 = vcvt.s32.f32 %v347
  %v380 = vcvt.s32.f32 %v348
  %v381 = vcvt.s32.f32 %v349
  %v382 = vcvt.s32.f32 %v350
  %v383 = vcvt.s32.f32 %v351
  %v384 = vcvt.s32.f32 %v352
  %v385 = vcvt.s32.f32 %v353
  %v386 = vcvt.s32.f32 %v354
  %v387 = vcvt.s32.f32 %v355
  %v388 = vcvt.s32.f32 %v356
  %v389 = vcvt.s32.f32 %v357
  %v390 = vcvt.s32.f32 %v358
  %v391 = vcvt.s32.f32 %v359
  %v392 = vcvt.s32.f32 %v360
  %v393 = vcvt.s32.f32 %v361
  %v394 = vcvt.s32.f32 %v362
  %v395 = vcvt.s32.f32 %v363
  %v396 = vcvt.s32.f32 %v364
  %v397 = vcvt.s32.f32 %v365
  %v398 = vcvt.s32.f32 %v366
  %v399 = vcvt.s32.f32 %v367
  %v400 = vcvt.s32.f32 %v368
  %v401 = vcvt.s32.f32 %v369
  %v402 = vcvt.s32.f32 %v370
  %v403 = vcvt.s32.f32 %v371
  %v404 = vcvt.s32.f32 %v372
  %v405 = vcvt.s32.f32 %v373
  %v406 = vcvt.s32.f32 %v374
  %v407 = vadd.f32 %v261, %v375
  %v408 = vadd.f32 %v262, %v376
  %v409 = vadd.f32 %v263, %v377
  %v410 = vadd.f32 %v264, %v378
  %v411 = vadd.f32 %v265, %v379
  %v412 = vadd.f32 %v266, %v380
  %v413 = vadd.f32 %v267, %v381
  %v414 = vadd.f32 %v268, %v382
  %v415 = vadd.f32 %v269, %v383
  %v416 = vadd.f32 %v270, %v384
  %v417 = vadd.f32 %v271, %v385
  %v418 = vadd.f32 %v272, %v386
  %v419 = vadd.f32 %v273, %v387
  %v420 = vadd.f32 %v274, %v388
  %v421 = vadd.f32 %v275, %v389
  %v422 = vadd.f32 %v276, %v390
  %v423 = vadd.f32 %v277, %v391
  %v424 = vadd.f32 %v278, %v392
  %v425 = vadd.f32 %v279, %v393
  %v426 = vadd.f32 %v280, %v394
  %v427 = vadd.f32 %v281, %v395
  %v428 = vadd.f32 %v282, %v396
  %v429 = vadd.f32 %v283, %v397
  %v430 = vadd.f32 %v284, %v398
  %v431 = vadd.f32 %v285, %v399
  %v432 = vadd.f32 %v286, %v400
  %v433 = vadd.f32 %v287, %v401
  %v434 = vadd.f32 %v288, %v402
  %v435 = vadd.f32 %v289, %v403
  %v436 = vadd.f32 %v290, %v404
  %v437 = vadd.f32 %v291, %v405
  %v438 = vadd.f32 %v292, %v406
  %s439 = scalar_lea.vmem %s0, 3
  %v440 = vld [vmem:[%s439] ss:$8 sm:$0xf]
  %v441 = vlaneseq
  %v442 = vshrl.u32 %v441, 7
  %v443 = vsub.s32 0, %v442
  %v444 = vrot.slane %v440, %v443
  %v445 = vlaneseq
  %v446 = vshrl.u32 %v445, 7
  %v447 = vsub.s32 1, %v446
  %v448 = vrot.slane %v440, %v447
  %v449 = vlaneseq
  %v450 = vshrl.u32 %v449, 7
  %v451 = vsub.s32 2, %v450
  %v452 = vrot.slane %v440, %v451
  %v453 = vlaneseq
  %v454 = vshrl.u32 %v453, 7
  %v455 = vsub.s32 3, %v454
  %v456 = vrot.slane %v440, %v455
  %vm457 = vcmp.eq.s32.totalorder %v26, %v444
  %vm458 = vcmp.eq.s32.totalorder %v26, %v448
  %vm459 = vcmp.eq.s32.totalorder %v26, %v452
  %vm460 = vcmp.eq.s32.totalorder %v26, %v456
  %vm461 = vcmp.eq.s32.totalorder %v27, %v444
  %vm462 = vcmp.eq.s32.totalorder %v27, %v448
  %vm463 = vcmp.eq.s32.totalorder %v27, %v452
  %vm464 = vcmp.eq.s32.totalorder %v27, %v456
  %vm465 = vcmp.eq.s32.totalorder %v28, %v444
  %vm466 = vcmp.eq.s32.totalorder %v28, %v448
  %vm467 = vcmp.eq.s32.totalorder %v28, %v452
  %vm468 = vcmp.eq.s32.totalorder %v28, %v456
  %vm469 = vcmp.eq.s32.totalorder %v29, %v444
  %vm470 = vcmp.eq.s32.totalorder %v29, %v448
  %vm471 = vcmp.eq.s32.totalorder %v29, %v452
  %vm472 = vcmp.eq.s32.totalorder %v29, %v456
  %vm473 = vcmp.eq.s32.totalorder %v30, %v444
  %vm474 = vcmp.eq.s32.totalorder %v30, %v448
  %vm475 = vcmp.eq.s32.totalorder %v30, %v452
  %vm476 = vcmp.eq.s32.totalorder %v30, %v456
  %vm477 = vcmp.eq.s32.totalorder %v31, %v444
  %vm478 = vcmp.eq.s32.totalorder %v31, %v448
  %vm479 = vcmp.eq.s32.totalorder %v31, %v452
  %vm480 = vcmp.eq.s32.totalorder %v31, %v456
  %vm481 = vcmp.eq.s32.totalorder %v32, %v444
  %vm482 = vcmp.eq.s32.totalorder %v32, %v448
  %vm483 = vcmp.eq.s32.totalorder %v32, %v452
  %vm484 = vcmp.eq.s32.totalorder %v32, %v456
  %vm485 = vcmp.eq.s32.totalorder %v33, %v444
  %vm486 = vcmp.eq.s32.totalorder %v33, %v448
  %vm487 = vcmp.eq.s32.totalorder %v33, %v452
  %vm488 = vcmp.eq.s32.totalorder %v33, %v456
  %v489 = vsel %vm457, 1, 0
  %v490 = vsel %vm458, 1, 0
  %v491 = vsel %vm459, 1, 0
  %v492 = vsel %vm460, 1, 0
  %v493 = vsel %vm461, 1, 0
  %v494 = vsel %vm462, 1, 0
  %v495 = vsel %vm463, 1, 0
  %v496 = vsel %vm464, 1, 0
  %v497 = vsel %vm465, 1, 0
  %v498 = vsel %vm466, 1, 0
  %v499 = vsel %vm467, 1, 0
  %v500 = vsel %vm468, 1, 0
  %v501 = vsel %vm469, 1, 0
  %v502 = vsel %vm470, 1, 0
  %v503 = vsel %vm471, 1, 0
  %v504 = vsel %vm472, 1, 0
  %v505 = vsel %vm473, 1, 0
  %v506 = vsel %vm474, 1, 0
  %v507 = vsel %vm475, 1, 0
  %v508 = vsel %vm476, 1, 0
  %v509 = vsel %vm477, 1, 0
  %v510 = vsel %vm478, 1, 0
  %v511 = vsel %vm479, 1, 0
  %v512 = vsel %vm480, 1, 0
  %v513 = vsel %vm481, 1, 0
  %v514 = vsel %vm482, 1, 0
  %v515 = vsel %vm483, 1, 0
  %v516 = vsel %vm484, 1, 0
  %v517 = vsel %vm485, 1, 0
  %v518 = vsel %vm486, 1, 0
  %v519 = vsel %vm487, 1, 0
  %v520 = vsel %vm488, 1, 0
  %v521 = vcvt.s32.f32 %v489
  %v522 = vcvt.s32.f32 %v490
  %v523 = vcvt.s32.f32 %v491
  %v524 = vcvt.s32.f32 %v492
  %v525 = vcvt.s32.f32 %v493
  %v526 = vcvt.s32.f32 %v494
  %v527 = vcvt.s32.f32 %v495
  %v528 = vcvt.s32.f32 %v496
  %v529 = vcvt.s32.f32 %v497
  %v530 = vcvt.s32.f32 %v498
  %v531 = vcvt.s32.f32 %v499
  %v532 = vcvt.s32.f32 %v500
  %v533 = vcvt.s32.f32 %v501
  %v534 = vcvt.s32.f32 %v502
  %v535 = vcvt.s32.f32 %v503
  %v536 = vcvt.s32.f32 %v504
  %v537 = vcvt.s32.f32 %v505
  %v538 = vcvt.s32.f32 %v506
  %v539 = vcvt.s32.f32 %v507
  %v540 = vcvt.s32.f32 %v508
  %v541 = vcvt.s32.f32 %v509
  %v542 = vcvt.s32.f32 %v510
  %v543 = vcvt.s32.f32 %v511
  %v544 = vcvt.s32.f32 %v512
  %v545 = vcvt.s32.f32 %v513
  %v546 = vcvt.s32.f32 %v514
  %v547 = vcvt.s32.f32 %v515
  %v548 = vcvt.s32.f32 %v516
  %v549 = vcvt.s32.f32 %v517
  %v550 = vcvt.s32.f32 %v518
  %v551 = vcvt.s32.f32 %v519
  %v552 = vcvt.s32.f32 %v520
  %v553 = vadd.f32 %v407, %v521
  %v554 = vadd.f32 %v408, %v522
  %v555 = vadd.f32 %v409, %v523
  %v556 = vadd.f32 %v410, %v524
  %v557 = vadd.f32 %v411, %v525
  %v558 = vadd.f32 %v412, %v526
  %v559 = vadd.f32 %v413, %v527
  %v560 = vadd.f32 %v414, %v528
  %v561 = vadd.f32 %v415, %v529
  %v562 = vadd.f32 %v416, %v530
  %v563 = vadd.f32 %v417, %v531
  %v564 = vadd.f32 %v418, %v532
  %v565 = vadd.f32 %v419, %v533
  %v566 = vadd.f32 %v420, %v534
  %v567 = vadd.f32 %v421, %v535
  %v568 = vadd.f32 %v422, %v536
  %v569 = vadd.f32 %v423, %v537
  %v570 = vadd.f32 %v424, %v538
  %v571 = vadd.f32 %v425, %v539
  %v572 = vadd.f32 %v426, %v540
  %v573 = vadd.f32 %v427, %v541
  %v574 = vadd.f32 %v428, %v542
  %v575 = vadd.f32 %v429, %v543
  %v576 = vadd.f32 %v430, %v544
  %v577 = vadd.f32 %v431, %v545
  %v578 = vadd.f32 %v432, %v546
  %v579 = vadd.f32 %v433, %v547
  %v580 = vadd.f32 %v434, %v548
  %v581 = vadd.f32 %v435, %v549
  %v582 = vadd.f32 %v436, %v550
  %v583 = vadd.f32 %v437, %v551
  %v584 = vadd.f32 %v438, %v552
  %s585 = scalar_lea.vmem %s0, 4
  %v586 = vld [vmem:[%s585] ss:$8 sm:$0xf]
  %v587 = vlaneseq
  %v588 = vshrl.u32 %v587, 7
  %v589 = vsub.s32 0, %v588
  %v590 = vrot.slane %v586, %v589
  %v591 = vlaneseq
  %v592 = vshrl.u32 %v591, 7
  %v593 = vsub.s32 1, %v592
  %v594 = vrot.slane %v586, %v593
  %v595 = vlaneseq
  %v596 = vshrl.u32 %v595, 7
  %v597 = vsub.s32 2, %v596
  %v598 = vrot.slane %v586, %v597
  %v599 = vlaneseq
  %v600 = vshrl.u32 %v599, 7
  %v601 = vsub.s32 3, %v600
  %v602 = vrot.slane %v586, %v601
  %vm603 = vcmp.eq.s32.totalorder %v26, %v590
  %vm604 = vcmp.eq.s32.totalorder %v26, %v594
  %vm605 = vcmp.eq.s32.totalorder %v26, %v598
  %vm606 = vcmp.eq.s32.totalorder %v26, %v602
  %vm607 = vcmp.eq.s32.totalorder %v27, %v590
  %vm608 = vcmp.eq.s32.totalorder %v27, %v594
  %vm609 = vcmp.eq.s32.totalorder %v27, %v598
  %vm610 = vcmp.eq.s32.totalorder %v27, %v602
  %vm611 = vcmp.eq.s32.totalorder %v28, %v590
  %vm612 = vcmp.eq.s32.totalorder %v28, %v594
  %vm613 = vcmp.eq.s32.totalorder %v28, %v598
  %vm614 = vcmp.eq.s32.totalorder %v28, %v602
  %vm615 = vcmp.eq.s32.totalorder %v29, %v590
  %vm616 = vcmp.eq.s32.totalorder %v29, %v594
  %vm617 = vcmp.eq.s32.totalorder %v29, %v598
  %vm618 = vcmp.eq.s32.totalorder %v29, %v602
  %vm619 = vcmp.eq.s32.totalorder %v30, %v590
  %vm620 = vcmp.eq.s32.totalorder %v30, %v594
  %vm621 = vcmp.eq.s32.totalorder %v30, %v598
  %vm622 = vcmp.eq.s32.totalorder %v30, %v602
  %vm623 = vcmp.eq.s32.totalorder %v31, %v590
  %vm624 = vcmp.eq.s32.totalorder %v31, %v594
  %vm625 = vcmp.eq.s32.totalorder %v31, %v598
  %vm626 = vcmp.eq.s32.totalorder %v31, %v602
  %vm627 = vcmp.eq.s32.totalorder %v32, %v590
  %vm628 = vcmp.eq.s32.totalorder %v32, %v594
  %vm629 = vcmp.eq.s32.totalorder %v32, %v598
  %vm630 = vcmp.eq.s32.totalorder %v32, %v602
  %vm631 = vcmp.eq.s32.totalorder %v33, %v590
  %vm632 = vcmp.eq.s32.totalorder %v33, %v594
  %vm633 = vcmp.eq.s32.totalorder %v33, %v598
  %vm634 = vcmp.eq.s32.totalorder %v33, %v602
  %v635 = vsel %vm603, 1, 0
  %v636 = vsel %vm604, 1, 0
  %v637 = vsel %vm605, 1, 0
  %v638 = vsel %vm606, 1, 0
  %v639 = vsel %vm607, 1, 0
  %v640 = vsel %vm608, 1, 0
  %v641 = vsel %vm609, 1, 0
  %v642 = vsel %vm610, 1, 0
  %v643 = vsel %vm611, 1, 0
  %v644 = vsel %vm612, 1, 0
  %v645 = vsel %vm613, 1, 0
  %v646 = vsel %vm614, 1, 0
  %v647 = vsel %vm615, 1, 0
  %v648 = vsel %vm616, 1, 0
  %v649 = vsel %vm617, 1, 0
  %v650 = vsel %vm618, 1, 0
  %v651 = vsel %vm619, 1, 0
  %v652 = vsel %vm620, 1, 0
  %v653 = vsel %vm621, 1, 0
  %v654 = vsel %vm622, 1, 0
  %v655 = vsel %vm623, 1, 0
  %v656 = vsel %vm624, 1, 0
  %v657 = vsel %vm625, 1, 0
  %v658 = vsel %vm626, 1, 0
  %v659 = vsel %vm627, 1, 0
  %v660 = vsel %vm628, 1, 0
  %v661 = vsel %vm629, 1, 0
  %v662 = vsel %vm630, 1, 0
  %v663 = vsel %vm631, 1, 0
  %v664 = vsel %vm632, 1, 0
  %v665 = vsel %vm633, 1, 0
  %v666 = vsel %vm634, 1, 0
  %v667 = vcvt.s32.f32 %v635
  %v668 = vcvt.s32.f32 %v636
  %v669 = vcvt.s32.f32 %v637
  %v670 = vcvt.s32.f32 %v638
  %v671 = vcvt.s32.f32 %v639
  %v672 = vcvt.s32.f32 %v640
  %v673 = vcvt.s32.f32 %v641
  %v674 = vcvt.s32.f32 %v642
  %v675 = vcvt.s32.f32 %v643
  %v676 = vcvt.s32.f32 %v644
  %v677 = vcvt.s32.f32 %v645
  %v678 = vcvt.s32.f32 %v646
  %v679 = vcvt.s32.f32 %v647
  %v680 = vcvt.s32.f32 %v648
  %v681 = vcvt.s32.f32 %v649
  %v682 = vcvt.s32.f32 %v650
  %v683 = vcvt.s32.f32 %v651
  %v684 = vcvt.s32.f32 %v652
  %v685 = vcvt.s32.f32 %v653
  %v686 = vcvt.s32.f32 %v654
  %v687 = vcvt.s32.f32 %v655
  %v688 = vcvt.s32.f32 %v656
  %v689 = vcvt.s32.f32 %v657
  %v690 = vcvt.s32.f32 %v658
  %v691 = vcvt.s32.f32 %v659
  %v692 = vcvt.s32.f32 %v660
  %v693 = vcvt.s32.f32 %v661
  %v694 = vcvt.s32.f32 %v662
  %v695 = vcvt.s32.f32 %v663
  %v696 = vcvt.s32.f32 %v664
  %v697 = vcvt.s32.f32 %v665
  %v698 = vcvt.s32.f32 %v666
  %v699 = vadd.f32 %v553, %v667
  %v700 = vadd.f32 %v554, %v668
  %v701 = vadd.f32 %v555, %v669
  %v702 = vadd.f32 %v556, %v670
  %v703 = vadd.f32 %v557, %v671
  %v704 = vadd.f32 %v558, %v672
  %v705 = vadd.f32 %v559, %v673
  %v706 = vadd.f32 %v560, %v674
  %v707 = vadd.f32 %v561, %v675
  %v708 = vadd.f32 %v562, %v676
  %v709 = vadd.f32 %v563, %v677
  %v710 = vadd.f32 %v564, %v678
  %v711 = vadd.f32 %v565, %v679
  %v712 = vadd.f32 %v566, %v680
  %v713 = vadd.f32 %v567, %v681
  %v714 = vadd.f32 %v568, %v682
  %v715 = vadd.f32 %v569, %v683
  %v716 = vadd.f32 %v570, %v684
  %v717 = vadd.f32 %v571, %v685
  %v718 = vadd.f32 %v572, %v686
  %v719 = vadd.f32 %v573, %v687
  %v720 = vadd.f32 %v574, %v688
  %v721 = vadd.f32 %v575, %v689
  %v722 = vadd.f32 %v576, %v690
  %v723 = vadd.f32 %v577, %v691
  %v724 = vadd.f32 %v578, %v692
  %v725 = vadd.f32 %v579, %v693
  %v726 = vadd.f32 %v580, %v694
  %v727 = vadd.f32 %v581, %v695
  %v728 = vadd.f32 %v582, %v696
  %v729 = vadd.f32 %v583, %v697
  %v730 = vadd.f32 %v584, %v698
  %v731 = vld [vmem:[%s1] sm:$0xf]
  %v732 = vld [vmem:[%s1 + $0x4] sm:$0xf]
  %v733 = vld [vmem:[%s1 + $0x8] sm:$0xf]
  %v734 = vld [vmem:[%s1 + $0xc] sm:$0xf]
  %v735 = vpack.c.bf16 %v703, %v699
  %v736 = vpack.c.bf16 %v704, %v700
  %v737 = vpack.c.bf16 %v705, %v701
  %v738 = vpack.c.bf16 %v706, %v702
  %v739 = vpack.c.bf16 %v711, %v707
  %v740 = vpack.c.bf16 %v712, %v708
  %v741 = vpack.c.bf16 %v713, %v709
  %v742 = vpack.c.bf16 %v714, %v710
  %v743 = vpack.c.bf16 %v719, %v715
  %v744 = vpack.c.bf16 %v720, %v716
  %v745 = vpack.c.bf16 %v721, %v717
  %v746 = vpack.c.bf16 %v722, %v718
  %v747 = vpack.c.bf16 %v727, %v723
  %v748 = vpack.c.bf16 %v728, %v724
  %v749 = vpack.c.bf16 %v729, %v725
  %v750 = vpack.c.bf16 %v730, %v726
  %v755 = vunpack.c.l.b16 %v731
  %v756 = vunpack.c.l.b16 %v732
  %v757 = vunpack.c.l.b16 %v733
  %v758 = vunpack.c.l.b16 %v734
  %v759 = vpack.c.b16 %v756, %v755
  %v760 = vpack.c.b16 %v758, %v757
  %vm761 = vcmask 523264
  %v763 = vsel %vm761, %v759, 0
  %v766 = vsel %vm761, %v760, 0
  %768 = vmatprep.subr.bf16.mxu0 %v736
  %769 = vmatpush1.bf16.msra.mxu0 %v735
  %770 = vmatprep.subr.bf16.mxu0 %v740
  %771 = vmatpush1.bf16.msra.mxu0 %v739
  %772 = vmatprep.subr.bf16.mxu0 %v744
  %773 = vmatpush1.bf16.msra.mxu0 %v743
  %774 = vmatprep.subr.bf16.mxu0 %v748
  %775 = vmatpush1.bf16.msra.mxu0 %v747
  %776 = vmatprep.subr.bf16.mxu0 0
  %777 = vmatpush1.bf16.msra.mxu0 0
  %778 = vmatprep.subr.bf16.mxu0 0
  %779 = vmatpush1.bf16.msra.mxu0 0
  %780 = vmatprep.subr.bf16.mxu0 0
  %781 = vmatpush1.bf16.msra.mxu0 0
  %782 = vmatprep.subr.bf16.mxu0 0
  %783 = vmatpush1.bf16.msra.mxu0 0
  %784 = vmatprep.subr.bf16.mxu0 0
  %785 = vmatpush1.bf16.msra.mxu0 0
  %786 = vmatprep.subr.bf16.mxu0 0
  %787 = vmatpush1.bf16.msra.mxu0 0
  %788 = vmatprep.subr.bf16.mxu0 0
  %789 = vmatpush1.bf16.msra.mxu0 0
  %790 = vmatprep.subr.bf16.mxu0 0
  %791 = vmatpush1.bf16.msra.mxu0 0
  %792 = vmatprep.subr.bf16.mxu0 0
  %793 = vmatpush1.bf16.msra.mxu0 0
  %794 = vmatprep.subr.bf16.mxu0 0
  %795 = vmatpush1.bf16.msra.mxu0 0
  %796 = vmatprep.subr.bf16.mxu0 0
  %797 = vmatpush1.bf16.msra.mxu0 0
  %798 = vmatprep.subr.bf16.mxu0 0
  %799 = vmatpush1.bf16.msra.mxu0 0
  %800 = vmatprep.mubr.bf16.mxu0 0
  %801 = vmatmul.mubr.bf16.gmra.mrb[0].mxu0 %v763
  %v802 = vpop.f32.mrb[0].mxu0
  %v803 = vadd.f32 0.0, %v802
  %v804 = vpop.f32.mrb[0].mxu0
  %v805 = vadd.f32 0.0, %v804
  %v806 = vpop.f32.mrb[0].mxu0
  %v807 = vadd.f32 0.0, %v806
  %v808 = vpop.f32.mrb[0].mxu0
  %v809 = vadd.f32 0.0, %v808
  %810 = vmatprep.mubr.bf16.mxu0 0
  %811 = vmatmul.mubr.bf16.gmra.mrb[0].mxu0 %v766
  %v812 = vpop.f32.mrb[0].mxu0
  %v813 = vadd.f32 0.0, %v812
  %v814 = vpop.f32.mrb[0].mxu0
  %v815 = vadd.f32 0.0, %v814
  %v816 = vpop.f32.mrb[0].mxu0
  %v817 = vadd.f32 0.0, %v816
  %v818 = vpop.f32.mrb[0].mxu0
  %v819 = vadd.f32 0.0, %v818
  %820 = vdwg.mxu0
  %821 = vmatprep.subr.bf16.mxu0 %v738
  %822 = vmatpush1.bf16.msra.mxu0 %v737
  %823 = vmatprep.subr.bf16.mxu0 %v742
  %824 = vmatpush1.bf16.msra.mxu0 %v741
  %825 = vmatprep.subr.bf16.mxu0 %v746
  %826 = vmatpush1.bf16.msra.mxu0 %v745
  %827 = vmatprep.subr.bf16.mxu0 %v750
  %828 = vmatpush1.bf16.msra.mxu0 %v749
  %829 = vmatprep.subr.bf16.mxu0 0
  %830 = vmatpush1.bf16.msra.mxu0 0
  %831 = vmatprep.subr.bf16.mxu0 0
  %832 = vmatpush1.bf16.msra.mxu0 0
  %833 = vmatprep.subr.bf16.mxu0 0
  %834 = vmatpush1.bf16.msra.mxu0 0
  %835 = vmatprep.subr.bf16.mxu0 0
  %836 = vmatpush1.bf16.msra.mxu0 0
  %837 = vmatprep.subr.bf16.mxu0 0
  %838 = vmatpush1.bf16.msra.mxu0 0
  %839 = vmatprep.subr.bf16.mxu0 0
  %840 = vmatpush1.bf16.msra.mxu0 0
  %841 = vmatprep.subr.bf16.mxu0 0
  %842 = vmatpush1.bf16.msra.mxu0 0
  %843 = vmatprep.subr.bf16.mxu0 0
  %844 = vmatpush1.bf16.msra.mxu0 0
  %845 = vmatprep.subr.bf16.mxu0 0
  %846 = vmatpush1.bf16.msra.mxu0 0
  %847 = vmatprep.subr.bf16.mxu0 0
  %848 = vmatpush1.bf16.msra.mxu0 0
  %849 = vmatprep.subr.bf16.mxu0 0
  %850 = vmatpush1.bf16.msra.mxu0 0
  %851 = vmatprep.subr.bf16.mxu0 0
  %852 = vmatpush1.bf16.msra.mxu0 0
  %853 = vmatprep.mubr.bf16.mxu0 0
  %854 = vmatmul.mubr.bf16.gmra.mrb[0].mxu0 %v763
  %v855 = vpop.f32.mrb[0].mxu0
  %v856 = vadd.f32 0.0, %v855
  %v857 = vpop.f32.mrb[0].mxu0
  %v858 = vadd.f32 0.0, %v857
  %v859 = vpop.f32.mrb[0].mxu0
  %v860 = vadd.f32 0.0, %v859
  %v861 = vpop.f32.mrb[0].mxu0
  %v862 = vadd.f32 0.0, %v861
  %863 = vmatprep.mubr.bf16.mxu0 0
  %864 = vmatmul.mubr.bf16.gmra.mrb[0].mxu0 %v766
  %v865 = vpop.f32.mrb[0].mxu0
  %v866 = vadd.f32 0.0, %v865
  %v867 = vpop.f32.mrb[0].mxu0
  %v868 = vadd.f32 0.0, %v867
  %v869 = vpop.f32.mrb[0].mxu0
  %v870 = vadd.f32 0.0, %v869
  %v871 = vpop.f32.mrb[0].mxu0
  %v872 = vadd.f32 0.0, %v871
  %873 = vdwg.mxu0
  %v874 = vmax.f32 %v803, 0.0
  %v875 = vmax.f32 %v805, 0.0
  %v876 = vmax.f32 %v856, 0.0
  %v877 = vmax.f32 %v858, 0.0
  %v878 = vmax.f32 %v807, 0.0
  %v879 = vmax.f32 %v809, 0.0
  %v880 = vmax.f32 %v860, 0.0
  %v881 = vmax.f32 %v862, 0.0
  %v882 = vmax.f32 %v813, 0.0
  %v883 = vmax.f32 %v815, 0.0
  %v884 = vmax.f32 %v866, 0.0
  %v885 = vmax.f32 %v868, 0.0
  %v886 = vmax.f32 %v817, 0.0
  %v887 = vmax.f32 %v819, 0.0
  %v888 = vmax.f32 %v870, 0.0
  %v889 = vmax.f32 %v872, 0.0
  %v890 = vld [vmem:[%s2] sm:$0xf]
  %v891 = vld [vmem:[%s2 + $0x4] sm:$0xf]
  %v892 = vld [vmem:[%s2 + $0x8] sm:$0xf]
  %v893 = vld [vmem:[%s2 + $0xc] sm:$0xf]
  %v894 = vpack.c.bf16 %v878, %v874
  %v895 = vpack.c.bf16 %v879, %v875
  %v896 = vpack.c.bf16 %v880, %v876
  %v897 = vpack.c.bf16 %v881, %v877
  %v898 = vpack.c.bf16 %v886, %v882
  %v899 = vpack.c.bf16 %v887, %v883
  %v900 = vpack.c.bf16 %v888, %v884
  %v901 = vpack.c.bf16 %v889, %v885
  %v902 = vld [vmem:[%s3] sm:$0xff]
  %v903 = vld [vmem:[%s3 + $0x8] sm:$0xff]
  %v904 = vld [vmem:[%s3 + $0x10] sm:$0xff]
  %v905 = vld [vmem:[%s3 + $0x18] sm:$0xff]
  %907 = vset.pattern.permute.xlu0 0
  %908 = vperm.xlu0 %907, %v902
  %v909 = vpop.permute.xlu0 %908
  %912 = vset.pattern.permute.xlu0 0
  %913 = vperm.xlu0 %912, %v903
  %v914 = vpop.permute.xlu0 %913
  %917 = vset.pattern.permute.xlu0 0
  %918 = vperm.xlu0 %917, %v904
  %v919 = vpop.permute.xlu0 %918
  %922 = vset.pattern.permute.xlu0 0
  %923 = vperm.xlu0 %922, %v905
  %v924 = vpop.permute.xlu0 %923
  %v930 = vunpack.c.l.b16 %v890
  %v931 = vunpack.c.l.b16 %v891
  %v932 = vunpack.c.l.b16 %v892
  %v933 = vunpack.c.l.b16 %v893
  %v934 = vpack.c.b16 %v931, %v930
  %v935 = vpack.c.b16 %v933, %v932
  %vm936 = vcmask 261120
  %v938 = vsel %vm936, %v934, 0
  %v941 = vsel %vm936, %v935, 0
  %943 = vmatprep.subr.bf16.mxu0 %v895
  %944 = vmatpush1.bf16.msra.mxu0 %v894
  %945 = vmatprep.subr.bf16.mxu0 %v899
  %946 = vmatpush1.bf16.msra.mxu0 %v898
  %947 = vmatprep.subr.bf16.mxu0 0
  %948 = vmatpush1.bf16.msra.mxu0 0
  %949 = vmatprep.subr.bf16.mxu0 0
  %950 = vmatpush1.bf16.msra.mxu0 0
  %951 = vmatprep.subr.bf16.mxu0 0
  %952 = vmatpush1.bf16.msra.mxu0 0
  %953 = vmatprep.subr.bf16.mxu0 0
  %954 = vmatpush1.bf16.msra.mxu0 0
  %955 = vmatprep.subr.bf16.mxu0 0
  %956 = vmatpush1.bf16.msra.mxu0 0
  %957 = vmatprep.subr.bf16.mxu0 0
  %958 = vmatpush1.bf16.msra.mxu0 0
  %959 = vmatprep.subr.bf16.mxu0 0
  %960 = vmatpush1.bf16.msra.mxu0 0
  %961 = vmatprep.subr.bf16.mxu0 0
  %962 = vmatpush1.bf16.msra.mxu0 0
  %963 = vmatprep.subr.bf16.mxu0 0
  %964 = vmatpush1.bf16.msra.mxu0 0
  %965 = vmatprep.subr.bf16.mxu0 0
  %966 = vmatpush1.bf16.msra.mxu0 0
  %967 = vmatprep.subr.bf16.mxu0 0
  %968 = vmatpush1.bf16.msra.mxu0 0
  %969 = vmatprep.subr.bf16.mxu0 0
  %970 = vmatpush1.bf16.msra.mxu0 0
  %971 = vmatprep.subr.bf16.mxu0 0
  %972 = vmatpush1.bf16.msra.mxu0 0
  %973 = vmatprep.subr.bf16.mxu0 0
  %974 = vmatpush1.bf16.msra.mxu0 0
  %975 = vmatprep.mubr.bf16.mxu0 0
  %976 = vmatmul.mubr.bf16.gmra.mrb[0].mxu0 %v938
  %v977 = vpop.f32.mrb[0].mxu0
  %v978 = vadd.f32 %v909, %v977
  %v979 = vpop.f32.mrb[0].mxu0
  %v980 = vadd.f32 %v909, %v979
  %v981 = vpop.f32.mrb[0].mxu0
  %v982 = vadd.f32 %v914, %v981
  %v983 = vpop.f32.mrb[0].mxu0
  %v984 = vadd.f32 %v914, %v983
  %985 = vmatprep.mubr.bf16.mxu0 0
  %986 = vmatmul.mubr.bf16.gmra.mrb[0].mxu0 %v941
  %v987 = vpop.f32.mrb[0].mxu0
  %v988 = vadd.f32 %v919, %v987
  %v989 = vpop.f32.mrb[0].mxu0
  %v990 = vadd.f32 %v919, %v989
  %v991 = vpop.f32.mrb[0].mxu0
  %v992 = vadd.f32 %v924, %v991
  %v993 = vpop.f32.mrb[0].mxu0
  %v994 = vadd.f32 %v924, %v993
  %995 = vdwg.mxu0
  %996 = vmatprep.subr.bf16.mxu0 %v897
  %997 = vmatpush1.bf16.msra.mxu0 %v896
  %998 = vmatprep.subr.bf16.mxu0 %v901
  %999 = vmatpush1.bf16.msra.mxu0 %v900
  %1000 = vmatprep.subr.bf16.mxu0 0
  %1001 = vmatpush1.bf16.msra.mxu0 0
  %1002 = vmatprep.subr.bf16.mxu0 0
  %1003 = vmatpush1.bf16.msra.mxu0 0
  %1004 = vmatprep.subr.bf16.mxu0 0
  %1005 = vmatpush1.bf16.msra.mxu0 0
  %1006 = vmatprep.subr.bf16.mxu0 0
  %1007 = vmatpush1.bf16.msra.mxu0 0
  %1008 = vmatprep.subr.bf16.mxu0 0
  %1009 = vmatpush1.bf16.msra.mxu0 0
  %1010 = vmatprep.subr.bf16.mxu0 0
  %1011 = vmatpush1.bf16.msra.mxu0 0
  %1012 = vmatprep.subr.bf16.mxu0 0
  %1013 = vmatpush1.bf16.msra.mxu0 0
  %1014 = vmatprep.subr.bf16.mxu0 0
  %1015 = vmatpush1.bf16.msra.mxu0 0
  %1016 = vmatprep.subr.bf16.mxu0 0
  %1017 = vmatpush1.bf16.msra.mxu0 0
  %1018 = vmatprep.subr.bf16.mxu0 0
  %1019 = vmatpush1.bf16.msra.mxu0 0
  %1020 = vmatprep.subr.bf16.mxu0 0
  %1021 = vmatpush1.bf16.msra.mxu0 0
  %1022 = vmatprep.subr.bf16.mxu0 0
  %1023 = vmatpush1.bf16.msra.mxu0 0
  %1024 = vmatprep.subr.bf16.mxu0 0
  %1025 = vmatpush1.bf16.msra.mxu0 0
  %1026 = vmatprep.subr.bf16.mxu0 0
  %1027 = vmatpush1.bf16.msra.mxu0 0
  %1028 = vmatprep.mubr.bf16.mxu0 0
  %1029 = vmatmul.mubr.bf16.gmra.mrb[0].mxu0 %v938
  %v1030 = vpop.f32.mrb[0].mxu0
  %v1031 = vadd.f32 %v909, %v1030
  %v1032 = vpop.f32.mrb[0].mxu0
  %v1033 = vadd.f32 %v909, %v1032
  %v1034 = vpop.f32.mrb[0].mxu0
  %v1035 = vadd.f32 %v914, %v1034
  %v1036 = vpop.f32.mrb[0].mxu0
  %v1037 = vadd.f32 %v914, %v1036
  %1038 = vmatprep.mubr.bf16.mxu0 0
  %1039 = vmatmul.mubr.bf16.gmra.mrb[0].mxu0 %v941
  %v1040 = vpop.f32.mrb[0].mxu0
  %v1041 = vadd.f32 %v919, %v1040
  %v1042 = vpop.f32.mrb[0].mxu0
  %v1043 = vadd.f32 %v919, %v1042
  %v1044 = vpop.f32.mrb[0].mxu0
  %v1045 = vadd.f32 %v924, %v1044
  %v1046 = vpop.f32.mrb[0].mxu0
  %v1047 = vadd.f32 %v924, %v1046
  %1048 = vdwg.mxu0
  %v1049 = vmax.f32 %v978, 0.0
  %v1050 = vmax.f32 %v980, 0.0
  %v1051 = vmax.f32 %v1031, 0.0
  %v1052 = vmax.f32 %v1033, 0.0
  %v1053 = vmax.f32 %v982, 0.0
  %v1054 = vmax.f32 %v984, 0.0
  %v1055 = vmax.f32 %v1035, 0.0
  %v1056 = vmax.f32 %v1037, 0.0
  %v1057 = vmax.f32 %v988, 0.0
  %v1058 = vmax.f32 %v990, 0.0
  %v1059 = vmax.f32 %v1041, 0.0
  %v1060 = vmax.f32 %v1043, 0.0
  %v1061 = vmax.f32 %v992, 0.0
  %v1062 = vmax.f32 %v994, 0.0
  %v1063 = vmax.f32 %v1045, 0.0
  %v1064 = vmax.f32 %v1047, 0.0
  %v1065 = vld [vmem:[%s4] sm:$0xff]
  %v1066 = vld [vmem:[%s4 + $0x8] sm:$0xff]
  %v1067 = vld [vmem:[%s4 + $0x10] sm:$0xff]
  %v1068 = vld [vmem:[%s4 + $0x18] sm:$0xff]
  %1070 = vset.pattern.permute.xlu0 0
  %1071 = vperm.xlu0 %1070, %v1065
  %v1072 = vpop.permute.xlu0 %1071
  %1075 = vset.pattern.permute.xlu0 0
  %1076 = vperm.xlu0 %1075, %v1066
  %v1077 = vpop.permute.xlu0 %1076
  %1080 = vset.pattern.permute.xlu0 0
  %1081 = vperm.xlu0 %1080, %v1067
  %v1082 = vpop.permute.xlu0 %1081
  %1085 = vset.pattern.permute.xlu0 0
  %1086 = vperm.xlu0 %1085, %v1068
  %v1087 = vpop.permute.xlu0 %1086
  %v1089 = vmul.f32 %v1072, %v1049
  %v1090 = vmul.f32 %v1072, %v1050
  %v1091 = vmul.f32 %v1072, %v1051
  %v1092 = vmul.f32 %v1072, %v1052
  %v1093 = vmul.f32 %v1077, %v1053
  %v1094 = vmul.f32 %v1077, %v1054
  %v1095 = vmul.f32 %v1077, %v1055
  %v1096 = vmul.f32 %v1077, %v1056
  %v1097 = vmul.f32 %v1082, %v1057
  %v1098 = vmul.f32 %v1082, %v1058
  %v1099 = vmul.f32 %v1082, %v1059
  %v1100 = vmul.f32 %v1082, %v1060
  %v1101 = vmul.f32 %v1087, %v1061
  %v1102 = vmul.f32 %v1087, %v1062
  %v1103 = vmul.f32 %v1087, %v1063
  %v1104 = vmul.f32 %v1087, %v1064
  %v1105 = vadd.f32 %v1089, %v1093
  %v1106 = vadd.f32 %v1105, %v1097
  %v1107 = vadd.f32 %v1106, %v1101
  %v1108 = vrot.slane %v1107, 4
  %v1109 = vadd.f32 %v1107, %v1108
  %v1110 = vrot.slane %v1109, 2
  %v1111 = vadd.f32 %v1109, %v1110
  %v1112 = vrot.slane %v1111, 1
  %v1113 = vadd.f32 %v1111, %v1112
  %v1114 = vadd.f32 %v1090, %v1094
  %v1115 = vadd.f32 %v1114, %v1098
  %v1116 = vadd.f32 %v1115, %v1102
  %v1117 = vrot.slane %v1116, 4
  %v1118 = vadd.f32 %v1116, %v1117
  %v1119 = vrot.slane %v1118, 2
  %v1120 = vadd.f32 %v1118, %v1119
  %v1121 = vrot.slane %v1120, 1
  %v1122 = vadd.f32 %v1120, %v1121
  %v1123 = vadd.f32 %v1091, %v1095
  %v1124 = vadd.f32 %v1123, %v1099
  %v1125 = vadd.f32 %v1124, %v1103
  %v1126 = vrot.slane %v1125, 4
  %v1127 = vadd.f32 %v1125, %v1126
  %v1128 = vrot.slane %v1127, 2
  %v1129 = vadd.f32 %v1127, %v1128
  %v1130 = vrot.slane %v1129, 1
  %v1131 = vadd.f32 %v1129, %v1130
  %v1132 = vadd.f32 %v1092, %v1096
  %v1133 = vadd.f32 %v1132, %v1100
  %v1134 = vadd.f32 %v1133, %v1104
  %v1135 = vrot.slane %v1134, 4
  %v1136 = vadd.f32 %v1134, %v1135
  %v1137 = vrot.slane %v1136, 2
  %v1138 = vadd.f32 %v1136, %v1137
  %v1139 = vrot.slane %v1138, 1
  %v1140 = vadd.f32 %v1138, %v1139
  %s1141 = sld [smem:[#allocation2]]
  %v1142 = vstv %s1141
  %v1143 = vadd.f32 %v1113, %v1142
  %v1144 = vadd.f32 %v1122, %v1142
  %v1145 = vadd.f32 %v1131, %v1142
  %v1146 = vadd.f32 %v1140, %v1142
  %v1147 = vsub.f32 0.0, %v1143
  %v1148 = vsub.f32 0.0, %v1144
  %v1149 = vsub.f32 0.0, %v1145
  %v1150 = vsub.f32 0.0, %v1146
  %v1151 = vmul.f32 %v1147, 1.442695
  %v1152 = vpow.pop %v1151
  %v1153 = vmul.f32 %v1148, 1.442695
  %v1154 = vpow.pop %v1153
  %v1155 = vmul.f32 %v1149, 1.442695
  %v1156 = vpow.pop %v1155
  %v1157 = vmul.f32 %v1150, 1.442695
  %v1158 = vpow.pop %v1157
  %v1159 = vadd.f32 %v1152, 1.0
  %v1160 = vadd.f32 %v1154, 1.0
  %v1161 = vadd.f32 %v1156, 1.0
  %v1162 = vadd.f32 %v1158, 1.0
  %v1163 = vrcp.pop %v1159
  %v1164 = vrcp.pop %v1160
  %v1165 = vrcp.pop %v1161
  %v1166 = vrcp.pop %v1162
  %v1171 = vcombine.low %v1163, %v1164
  %v1172 = vcombine.low %v1165, %v1166
  %v1174 = vunpack.c.l.s4 1966171168
  %v1175 = vunpack.c.0.s8 %v1174
  %v1176 = vlaneseq
  %v1177 = vshrl.u32 %v1176, 7
  %v1178 = vsub.s32 %v1175, %v1177
  %v1179 = vrot.slane %v1171, %v1178
  %v1181 = vunpack.c.l.s4 1966171168
  %v1182 = vunpack.c.0.s8 %v1181
  %v1183 = vlaneseq
  %v1184 = vshrl.u32 %v1183, 7
  %v1185 = vsub.s32 %v1182, %v1184
  %v1186 = vrot.slane %v1172, %v1185
  %v1187 = vcombine.low %v1179, %v1186
  %v1189 = vunpack.c.l.s4 1966171168
  %v1190 = vunpack.c.0.s8 %v1189
  %v1191 = vlaneseq
  %v1192 = vshrl.u32 %v1191, 7
  %v1193 = vsub.s32 %v1190, %v1192
  %v1194 = vrot.slane %v1187, %v1193
  %v1196 = vlaneseq
  %vm1197 = vcmp.ge.s32.totalorder %v1196, 0
  %vm1198 = vcmp.lt.s32.totalorder %v1196, 512
  %vm1199 = vmand %vm1197, %vm1198
  %1200 = vst.msk [vmem:[%s6] sm:$0xf] %vm1199, %v1194
  // Predicated region
  $region26: #{value_net_forward.1} parent=0 // pred_check
    _
  $region27: #{value_net_forward.1} parent=0 // pred_check_branch
    %1202 = sbr.rel (0) target = $region29
  $region28: #{value_net_forward.1} parent=0 // pred_region
    _
  $region29: #{value_net_forward.1} parent=0 // pred_fallthru
    _
  // Predicated region
  $region30: #{value_net_forward.1} parent=0 // pred_check
    _
  $region31: #{value_net_forward.1} parent=0 // pred_check_branch
    %1204 = sbr.rel (0) target = $region33
  $region32: #{value_net_forward.1} parent=0 // pred_region
    _
  $region33: #{value_net_forward.1} parent=0 // pred_fallthru
    _

</llo_original>
